<compile_context>
chip_gen: v6e
topology: v6e:2x2x1
jax: 0.10.0
libtpu: 0.0.40
codegen_flags: <defaults>
</compile_context>

<pallas_src>
import jax
import jax.numpy as jnp
from jax.experimental import pallas as pl
from jax.experimental.pallas import tpu as pltpu


_VMEM_LIMIT_BYTES = 48 * 1024 * 1024   # scoped-VMEM limit we request (<= v7x 64 MiB)
_VMEM_SOFT_BUDGET = 40 * 1024 * 1024   # what the tile size is clamped against
_TARGET_TILES = 2                      # aim for >=2 grid steps (v7x megacore)


def _critic_kernel(x_ref, w1_ref, b1_ref, w2_ref, b2_ref, o_ref):
    # fc1: (tb, S) @ (S, H) on the MXU with f32 accumulation (inputs may be bf16).
    h = jnp.dot(x_ref[...], w1_ref[...], preferred_element_type=jnp.float32)
    # Bias + ReLU in f32 on the VPU.
    h = jnp.maximum(h + b1_ref[...].astype(jnp.float32), 0.0)
    # fc2 (H -> 1): VPU multiply + cross-lane reduction (XLU has slack) instead
    # of a 1-column MXU matmul.  w2_ref is the weight row (1, H).
    w2_row = w2_ref[...].astype(jnp.float32)
    v = jnp.sum(h * w2_row, axis=-1)          # (tb,)
    v = v + b2_ref[0, 0]                      # scalar bias from SMEM
    # Lane-dense store: tb along the lane axis of a (1, 1, tb) block.
    o_ref[...] = v[None, None].astype(o_ref.dtype)


def _cdiv(a, b):
    return (a + b - 1) // b


def _round_up(n, m):
    return ((n + m - 1) // m) * m


def _vmem_bytes(tb, S, H, x_item, w_item):
    # Worst-case pipeline buffering: 3 x-buffers, 2 copies of resident weights.
    return (3 * tb * S * x_item
            + 2 * (S * H * w_item + 2 * H * 4)
            + 2 * tb * 4              # lane-dense output (double-buffered)
            + tb * H * 4)             # f32 fc1 activation


def critic_net_forward(x, w1, b1, w2, b2, *, block_b=512, bf16_stream=True):
    """Fused CriticNet forward.

    x : (B, S)    w1 : (S, H)    b1 : (1, H) or (H,)
    w2 : (H, 1) or (H,)          b2 : (1, 1) / (1,) / scalar   ->  (B, 1)
    """
    B, S = x.shape
    H = w1.shape[1]
    out_dtype = x.dtype

    if bf16_stream:
        # Memory-bound on the x stream: halve HBM bytes. f32 accumulation is
        # preserved in-kernel via preferred_element_type.
        x = x.astype(jnp.bfloat16)
        w1 = w1.astype(jnp.bfloat16)

    # ---- batch tile selection --------------------------------------------
    n_tiles = max(_cdiv(B, block_b), 1)
    if B >= 8 * _TARGET_TILES:            # keep >=2 steps so both v7x cores work
        n_tiles = max(n_tiles, _TARGET_TILES)
    tb = _round_up(_cdiv(B, n_tiles), 8)  # even tiles -> minimal zero-row padding
    # Clamp against the VMEM budget (v7x only has 64 MiB; v5e scoped default 16 MiB).
    while tb > 8 and _vmem_bytes(tb, S, H, x.dtype.itemsize,
                                 w1.dtype.itemsize) > _VMEM_SOFT_BUDGET:
        tb = max(8, _round_up(tb // 2, 8))

    b_pad = _round_up(B, tb)
    if b_pad != B:
        x = jnp.pad(x, ((0, b_pad - B), (0, 0)))
    grid_n = b_pad // tb

    w2_row = jnp.reshape(w2, (1, H))      # lane-major row for the VPU reduction
    b1_row = jnp.reshape(b1, (1, H))
    b2_s = jnp.reshape(b2, (1, 1))

    cost = pl.CostEstimate(
        flops=2 * b_pad * S * H + 4 * b_pad * H,
        transcendentals=0,
        bytes_accessed=(b_pad * S * x.dtype.itemsize          # x stream
                        + S * H * w1.dtype.itemsize           # weights (once)
                        + H * (b1_row.dtype.itemsize + w2_row.dtype.itemsize)
                        + b2_s.dtype.itemsize
                        + b_pad * jnp.dtype(out_dtype).itemsize),
    )

    def _call(use_pipeline_mode):
        def spec(shape, index_map, buffers=None):
            kwargs = {}
            if use_pipeline_mode and buffers is not None:
                kwargs["pipeline_mode"] = pl.Buffered(buffers)
            return pl.BlockSpec(shape, index_map, **kwargs)

        return pl.pallas_call(
            _critic_kernel,
            out_shape=jax.ShapeDtypeStruct((grid_n, 1, tb), out_dtype),
            grid=(grid_n,),
            in_specs=[
                spec((tb, S), lambda i: (i, 0), buffers=3),   # x: streamed tiles
                spec((S, H), lambda i: (0, 0), buffers=1),    # w1: VMEM-resident
                spec((1, H), lambda i: (0, 0), buffers=1),    # b1: VMEM-resident
                spec((1, H), lambda i: (0, 0), buffers=1),    # w2 row: resident
                pl.BlockSpec((1, 1), lambda i: (0, 0),
                             memory_space=pltpu.MemorySpace.SMEM),  # b2: scalar
            ],
            # Lane-dense output block: (1, 1, tb) with tb on the lane axis.
            out_specs=pl.BlockSpec((1, 1, tb), lambda i: (i, 0, 0)),
            compiler_params=pltpu.CompilerParams(
                dimension_semantics=("parallel",),
                vmem_limit_bytes=_VMEM_LIMIT_BYTES),
            cost_estimate=cost,
        )(x, w1, b1_row, w2_row, b2_s)

    if hasattr(pl, "Buffered"):
        try:
            out = _call(True)
        except Exception:
            # pipeline_mode / Buffered(1) not supported on this JAX version:
            # fall back to default buffering (same math, slightly more VMEM).
            out = _call(False)
    else:
        out = _call(False)

    return out.reshape(b_pad, 1)[:B]


def init_critic_params(key, state_dim, hidden_dim, dtype=jnp.float32):
    """Deterministic init mirroring nn.Linear's U(-1/sqrt(fan_in), 1/sqrt(fan_in)).
    Weights stored as (in_features, out_features) relative to PyTorch."""
    k1, k2, k3, k4 = jax.random.split(key, 4)
    bound1 = 1.0 / jnp.sqrt(state_dim)
    bound2 = 1.0 / jnp.sqrt(hidden_dim)
    w1 = jax.random.uniform(k1, (state_dim, hidden_dim), dtype, -bound1, bound1)
    b1 = jax.random.uniform(k2, (1, hidden_dim), dtype, -bound1, bound1)
    w2 = jax.random.uniform(k3, (hidden_dim, 1), dtype, -bound2, bound2)
    b2 = jax.random.uniform(k4, (1, 1), dtype, -bound2, bound2)
    return w1, b1, w2, b2


def _ref_forward(x, w1, b1, w2, b2):
    return jnp.maximum(x @ w1 + b1, 0.0) @ w2 + b2


if __name__ == "__main__":
    key = jax.random.PRNGKey(0)
    kx, kp, kx2 = jax.random.split(key, 3)

    batch, state_dim, hidden_dim = 8, 16, 32
    x = jax.random.normal(kx, (batch, state_dim), jnp.float32)
    w1, b1, w2, b2 = init_critic_params(kp, state_dim, hidden_dim)

    # Path 1: default bf16-streamed x/W1 (f32 accumulation). Compare against a
    # reference computed on the same bf16-rounded inputs.
    out = jax.block_until_ready(critic_net_forward(x, w1, b1, w2, b2))
    x_b = x.astype(jnp.bfloat16).astype(jnp.float32)
    w1_b = w1.astype(jnp.bfloat16).astype(jnp.float32)
    ref = _ref_forward(x_b, w1_b, b1, w2, b2)
    assert out.shape == (batch, 1)
    assert jnp.allclose(out, ref, atol=1e-4, rtol=1e-4)

    # Path 2: pure-f32 stream, non-multiple-of-8 batch (exercises padding and a
    # multi-step grid / megacore-targeted tiling).
    x2 = jax.random.normal(kx2, (20, state_dim), jnp.float32)
    out2 = jax.block_until_ready(
        critic_net_forward(x2, w1, b1, w2, b2, bf16_stream=False))
    ref2 = _ref_forward(x2, w1, b1, w2, b2)
    assert out2.shape == (20, 1)
    assert jnp.allclose(out2, ref2, atol=1e-5, rtol=1e-5)

    print("KERNEL_OK")
</pallas_src>

<mosaic_0001>
module attributes {stable_mosaic.version = 11 : i64} {
  func.func @_critic_kernel(%arg0: i32, %arg1: memref<8x16xbf16, #tpu.memory_space<vmem>>, %arg2: memref<16x32xbf16, #tpu.memory_space<vmem>>, %arg3: memref<1x32xf32, #tpu.memory_space<vmem>>, %arg4: memref<1x32xf32, #tpu.memory_space<vmem>>, %arg5: memref<1x1xf32, #tpu.memory_space<smem>>, %arg6: memref<1x1x8xf32, #tpu.memory_space<vmem>>) attributes {dimension_semantics = [#tpu.dimension_semantics<parallel>], iteration_bounds = array<i64: 1>, scalar_prefetch = 0 : i64, scratch_operands = 0 : i64, tpu.core_type = #tpu.core_type<tc>, window_params = [{transform_indices = @transform_0, window_bounds = array<i64: 8, 16>}, {pipeline_mode = #tpu.pipeline_mode<synchronous>, transform_indices = @transform_1, window_bounds = array<i64: 16, 32>}, {pipeline_mode = #tpu.pipeline_mode<synchronous>, transform_indices = @transform_2, window_bounds = array<i64: 1, 32>}, {pipeline_mode = #tpu.pipeline_mode<synchronous>, transform_indices = @transform_3, window_bounds = array<i64: 1, 32>}, {transform_indices = @transform_4, window_bounds = array<i64: 1, 1>}, {transform_indices = @transform_5, window_bounds = array<i64: 1, 1, 8>}]} {
    %c0 = arith.constant 0 : index
    %c0_0 = arith.constant 0 : index
    %0 = vector.load %arg1[%c0, %c0_0] : memref<8x16xbf16, #tpu.memory_space<vmem>>, vector<8x16xbf16>
    %c0_1 = arith.constant 0 : index
    %c0_2 = arith.constant 0 : index
    %1 = vector.load %arg2[%c0_1, %c0_2] : memref<16x32xbf16, #tpu.memory_space<vmem>>, vector<16x32xbf16>
    %cst = arith.constant dense<0.000000e+00> : vector<8x32xf32>
    %2 = tpu.matmul %0, %1, %cst {dimension_numbers = #tpu.dot_dimension_numbers<[1], [0], [0], [1], [0, 0, 1, 1], [], []>} : vector<8x16xbf16>, vector<16x32xbf16>, vector<8x32xf32> -> vector<8x32xf32>
    %c0_3 = arith.constant 0 : index
    %c0_4 = arith.constant 0 : index
    %3 = vector.load %arg3[%c0_3, %c0_4] : memref<1x32xf32, #tpu.memory_space<vmem>>, vector<1x32xf32>
    %4 = vector.broadcast %3 : vector<1x32xf32> to vector<8x32xf32>
    %5 = arith.addf %2, %4 : vector<8x32xf32>
    %cst_5 = arith.constant 0.000000e+00 : f32
    %6 = vector.broadcast %cst_5 : f32 to vector<8x32xf32>
    %7 = arith.maximumf %5, %6 : vector<8x32xf32>
    %c0_6 = arith.constant 0 : index
    %c0_7 = arith.constant 0 : index
    %8 = vector.load %arg4[%c0_6, %c0_7] : memref<1x32xf32, #tpu.memory_space<vmem>>, vector<1x32xf32>
    %9 = vector.broadcast %8 : vector<1x32xf32> to vector<8x32xf32>
    %10 = arith.mulf %7, %9 : vector<8x32xf32>
    %cst_8 = arith.constant dense<0.000000e+00> : vector<8xf32>
    %11 = vector.multi_reduction <add>, %10, %cst_8 [1] : vector<8x32xf32> to vector<8xf32>
    %c0_9 = arith.constant 0 : index
    %c0_10 = arith.constant 0 : index
    %12 = memref.load %arg5[%c0_9, %c0_10] : memref<1x1xf32, #tpu.memory_space<smem>>
    %13 = vector.broadcast %12 : f32 to vector<8xf32>
    %14 = arith.addf %11, %13 : vector<8xf32>
    %15 = vector.shape_cast %14 : vector<8xf32> to vector<1x1x8xf32>
    %c0_11 = arith.constant 0 : index
    %c0_12 = arith.constant 0 : index
    %c0_13 = arith.constant 0 : index
    %16 = vector.load %arg6[%c0_11, %c0_12, %c0_13] : memref<1x1x8xf32, #tpu.memory_space<vmem>>, vector<1x1x8xf32>
    tpu.vector_store %arg6[%c0_11, %c0_12, %c0_13], %15 {strides = array<i32>} : memref<1x1x8xf32, #tpu.memory_space<vmem>>, vector<1x1x8xf32>,
    return
  }
  func.func @transform_0(%arg0: i32) -> (i32, i32) {
    %c0_i32 = arith.constant 0 : i32
    %c0_i32_0 = arith.constant 0 : i32
    return %arg0, %c0_i32 : i32, i32
  }
  func.func @transform_1(%arg0: i32) -> (i32, i32) {
    %c0_i32 = arith.constant 0 : i32
    %c0_i32_0 = arith.constant 0 : i32
    %c0_i32_1 = arith.constant 0 : i32
    return %c0_i32, %c0_i32_0 : i32, i32
  }
  func.func @transform_2(%arg0: i32) -> (i32, i32) {
    %c0_i32 = arith.constant 0 : i32
    %c0_i32_0 = arith.constant 0 : i32
    %c0_i32_1 = arith.constant 0 : i32
    return %c0_i32, %c0_i32_0 : i32, i32
  }
  func.func @transform_3(%arg0: i32) -> (i32, i32) {
    %c0_i32 = arith.constant 0 : i32
    %c0_i32_0 = arith.constant 0 : i32
    %c0_i32_1 = arith.constant 0 : i32
    return %c0_i32, %c0_i32_0 : i32, i32
  }
  func.func @transform_4(%arg0: i32) -> (i32, i32) {
    %c0_i32 = arith.constant 0 : i32
    %c0_i32_0 = arith.constant 0 : i32
    %c0_i32_1 = arith.constant 0 : i32
    return %c0_i32, %c0_i32_0 : i32, i32
  }
  func.func @transform_5(%arg0: i32) -> (i32, i32, i32) {
    %c0_i32 = arith.constant 0 : i32
    %c0_i32_0 = arith.constant 0 : i32
    %c0_i32_1 = arith.constant 0 : i32
    return %arg0, %c0_i32, %c0_i32_0 : i32, i32, i32
  }
}

</mosaic_0001>

<llo_original>
// kernel: tpu_custom_call.1
$region0: #{tpu_custom_call.1}
  #allocation0 [shape = 'u32[]', space=smem, size = 0x4, offset = 0x4, fixed_abs, tag = 'smem constant byte address 0x4 - core index']
  #allocation1 [shape = 'u32[144,128]{1,0:T(1,128)}', space=vmem, size = 0x12000, scoped, tag = 'internal scratch']
  #allocation2 [shape = 'f32[1,1]{1,0:T(1,128)S(6)}', space=smem, size = 0x200, scoped, tag = 'scoped memory for tpu_custom_call.1']
  %s0 = inlined_call_operand.hbm [shape: bf16[8,16], index: 0, kind: input, shape index: {}]
  %s1 = inlined_call_operand.hbm [shape: bf16[16,32], index: 1, kind: input, shape index: {}]
  %s2 = inlined_call_operand.vmem [shape: f32[1,32], index: 2, kind: input, shape index: {}]
  %s3 = inlined_call_operand.vmem [shape: f32[1,32], index: 3, kind: input, shape index: {}]
  %s4 = inlined_call_operand.<no memory space> [shape: f32[1,1], index: 4, kind: input, shape index: {}]
  %s5 = inlined_call_operand.hbm [shape: f32[1,1,8], index: 5, kind: output, shape index: {}]
  %s6 = sld [smem:[#allocation0]]
  $region38: #{tpu_custom_call.1} parent=0
    _
  %s8 = ssub.s32 1, %s6
  %s9 = scalar_select 0, %s8, %s6
  %10 = sst [smem:[#allocation2]] %s4
  $region1: #{tpu_custom_call.1} parent=0
    #allocation3 [shape = 'u8[2048]{0}', space=vmem, size = 0x800, scoped, tag = 'input window, operand 0, single buffered']
    #allocation4 [shape = 's32[1]{0}', space=sflag, size = 0x4, scoped, tag = 'scoped memory for tpu_custom_call.1']
    #allocation5 [shape = 's32[1]{0}', space=sflag, size = 0x4, scoped, tag = 'scoped memory for tpu_custom_call.1']
    #allocation6 [shape = 'u8[4096]{0}', space=vmem, size = 0x1000, scoped, tag = 'input window, operand 1, single buffered']
    #allocation7 [shape = 's32[1]{0}', space=sflag, size = 0x4, scoped, tag = 'scoped memory for tpu_custom_call.1']
    #allocation8 [shape = 'u8[512]{0}', space=vmem, size = 0x400, scoped, tag = 'output window, operand 0, single buffered']
    %11 = vsyncpa [#allocation4], 0
    %12 = vsyncpa [#allocation7], 0
    %13 = vsyncpa [#allocation5], 0
    // Predicated region
    $region2: #{tpu_custom_call.1} parent=1 // pred_check
      _
    $region3: #{tpu_custom_call.1} parent=1 // pred_check_branch
      %15 = sbr.rel (0) target = $region5
    $region4: #{tpu_custom_call.1} parent=1 // pred_region
      %s17 = ssub.s32 64, 64
      %18 = vsyncadd [#allocation4], %s17
      %s20 = sshll.u32 [#allocation3], 4
      %s21 = int_to_ptr.vmem [resolvable:$true] %s20
      %23 = dma.hbm_to_vmem [thread:$0]  %s0, 64, %s21, [#allocation4]
    $region5: #{tpu_custom_call.1} parent=1 // pred_fallthru
      _
    // Predicated region
    $region6: #{tpu_custom_call.1} parent=1 // pred_check
      _
    $region7: #{tpu_custom_call.1} parent=1 // pred_check_branch
      %25 = sbr.rel (0) target = $region9
    $region8: #{tpu_custom_call.1} parent=1 // pred_region
      %s27 = ssub.s32 128, 128
      %28 = vsyncadd [#allocation7], %s27
      %s29 = sshll.u32 [#allocation6], 4
      %s30 = int_to_ptr.vmem [resolvable:$true] %s29
      %35 = dma.hbm_to_vmem [thread:$0]  %s1, 128, %s30, [#allocation7], 64, 64, 4
    $region9: #{tpu_custom_call.1} parent=1 // pred_fallthru
      _
    // Predicated region
    $region10: #{tpu_custom_call.1} parent=1 // pred_check
      _
    $region11: #{tpu_custom_call.1} parent=1 // pred_check_branch
      %37 = sbr.rel (0) target = $region13
    $region12: #{tpu_custom_call.1} parent=1 // pred_region
      _
    $region13: #{tpu_custom_call.1} parent=1 // pred_fallthru
      _
    // Predicated region
    $region14: #{tpu_custom_call.1} parent=1 // pred_check
      _
    $region15: #{tpu_custom_call.1} parent=1 // pred_check_branch
      %39 = sbr.rel (0) target = $region17
    $region16: #{tpu_custom_call.1} parent=1 // pred_region
      _
    $region17: #{tpu_custom_call.1} parent=1 // pred_fallthru
      _
    // Predicated region
    $region18: #{tpu_custom_call.1} parent=1 // pred_check
      _
    $region19: #{tpu_custom_call.1} parent=1 // pred_check_branch
      %41 = sbr.rel (0) target = $region21
    $region20: #{tpu_custom_call.1} parent=1 // pred_region
      _
    $region21: #{tpu_custom_call.1} parent=1 // pred_fallthru
      _
    // Predicated region
    $region22: #{tpu_custom_call.1} parent=1 // pred_check
      _
    $region23: #{tpu_custom_call.1} parent=1 // pred_check_branch
      %43 = sbr.rel (0) target = $region25
    $region24: #{tpu_custom_call.1} parent=1 // pred_region
      %44 = dma.done [#allocation4], 64
    $region25: #{tpu_custom_call.1} parent=1 // pred_fallthru
      _
    // Predicated region
    $region26: #{tpu_custom_call.1} parent=1 // pred_check
      _
    $region27: #{tpu_custom_call.1} parent=1 // pred_check_branch
      %46 = sbr.rel (0) target = $region29
    $region28: #{tpu_custom_call.1} parent=1 // pred_region
      %47 = dma.done [#allocation7], 128
    $region29: #{tpu_custom_call.1} parent=1 // pred_fallthru
      _
    %v49 = vld [vmem:[#allocation3] sm:$0xf]
    %v50 = vld [vmem:[#allocation6] sm:$0xf]
    %v51 = vld [vmem:[#allocation6 + $0x4] sm:$0xf]
    %v52 = vld [vmem:[%s2] sm:$0x1]
    %v54 = vlaneseq
    %v55 = vshrl.u32 %v54, 7
    %v56 = vsub.s32 0, %v55
    %v57 = vrot.slane %v52, %v56
    %v61 = vunpack.c.l.b16 %v50
    %v62 = vunpack.c.l.b16 %v51
    %v63 = vpack.c.b16 %v62, %v61
    %vm65 = vcmask 130048
    %v67 = vsel %vm65, %v49, 0
    %69 = vmatprep.subr.bf16.mxu0 0
    %70 = vmatpush1.bf16.msra.mxu0 0
    %71 = vmatprep.subr.bf16.mxu0 0
    %72 = vmatpush1.bf16.msra.mxu0 0
    %73 = vmatprep.subr.bf16.mxu0 0
    %74 = vmatpush1.bf16.msra.mxu0 0
    %75 = vmatprep.subr.bf16.mxu0 0
    %76 = vmatpush1.bf16.msra.mxu0 0
    %77 = vmatprep.subr.bf16.mxu0 0
    %78 = vmatpush1.bf16.msra.mxu0 0
    %79 = vmatprep.subr.bf16.mxu0 0
    %80 = vmatpush1.bf16.msra.mxu0 0
    %81 = vmatprep.subr.bf16.mxu0 0
    %82 = vmatpush1.bf16.msra.mxu0 0
    %83 = vmatprep.subr.bf16.mxu0 0
    %84 = vmatpush1.bf16.msra.mxu0 %v63
    %85 = vmatprep.subr.bf16.mxu0 0
    %86 = vmatpush2.bf16.msra.mxu0 0
    %87 = vmatprep.subr.bf16.mxu0 0
    %88 = vmatpush2.bf16.msra.mxu0 0
    %89 = vmatprep.subr.bf16.mxu0 0
    %90 = vmatpush2.bf16.msra.mxu0 0
    %91 = vmatprep.subr.bf16.mxu0 0
    %92 = vmatpush2.bf16.msra.mxu0 0
    %93 = vmatprep.subr.bf16.mxu0 0
    %94 = vmatpush2.bf16.msra.mxu0 0
    %95 = vmatprep.subr.bf16.mxu0 0
    %96 = vmatpush2.bf16.msra.mxu0 0
    %97 = vmatprep.subr.bf16.mxu0 0
    %98 = vmatpush2.bf16.msra.mxu0 0
    %99 = vmatprep.subr.bf16.mxu0 0
    %100 = vmatpush2.bf16.msra.mxu0 0
    %101 = vmatprep.mubr.bf16.mxu0 0
    %102 = vmatmul.mubr.bf16.gmra.mxu0 %v67
    %v103 = vpop.f32.mrf.mxu0
    %v104 = vadd.f32 %v57, %v103
    %v105 = vpop.f32.mrf.mxu0
    %v106 = vpop.f32.mrf.mxu0
    %v107 = vpop.f32.mrf.mxu0
    %108 = vdwg.mxu0
    %v109 = vmax.f32 %v104, 0.0
    %v110 = vld [vmem:[%s3] sm:$0x1]
    %v112 = vlaneseq
    %v113 = vshrl.u32 %v112, 7
    %v114 = vsub.s32 0, %v113
    %v115 = vrot.slane %v110, %v114
    %v117 = vmul.f32 %v109, %v115
    %vm118 = vcmask 261120
    %v119 = vsel %vm118, %v117, 0.0
    %120 = vadd.xlane.f32.xlu0 %v119
    %v121 = vpop.xlane.xlu0 %120
    %s122 = sld [smem:[#allocation2]]
    %v123 = vstv %s122
    %v124 = vadd.f32 %v121, %v123
    %v126 = vlaneseq
    %v127 = vand.u32 %v126, 127
    %v128 = vlaneseq
    %v129 = vshrl.u32 %v128, 7
    %v130 = vsub.s32 %v127, %v129
    %v131 = vrot.slane %v124, %v130
    %vm133 = vcmask 57344
    %134 = vst.msk [vmem:[#allocation8] sm:$0x1] %vm133, %v131
    // Predicated region
    $region30: #{tpu_custom_call.1} parent=1 // pred_check
      _
    $region31: #{tpu_custom_call.1} parent=1 // pred_check_branch
      %136 = sbr.rel (0) target = $region33
    $region32: #{tpu_custom_call.1} parent=1 // pred_region
      %s138 = ssub.s32 16, 16
      %139 = vsyncadd [#allocation5], %s138
      %s141 = sshll.u32 [#allocation8], 4
      %s142 = int_to_ptr.vmem [resolvable:$true] %s141
      %144 = dma.vmem_to_hbm [thread:$0]  %s142, 16, %s5, [#allocation5]
    $region33: #{tpu_custom_call.1} parent=1 // pred_fallthru
      _
    // Predicated region
    $region34: #{tpu_custom_call.1} parent=1 // pred_check
      _
    $region35: #{tpu_custom_call.1} parent=1 // pred_check_branch
      %146 = sbr.rel (0) target = $region37
    $region36: #{tpu_custom_call.1} parent=1 // pred_region
      %147 = dma.done [#allocation5], 16
    $region37: #{tpu_custom_call.1} parent=1 // pred_fallthru
      _
    %148 = vsyncpa [#allocation4], 1
    %149 = vsyncpa [#allocation7], 1
    %150 = vsyncpa [#allocation5], 1

</llo_original>
